<compile_context>
chip_gen: v6e
topology: v6e:2x2x1
jax: 0.10.0
libtpu: 0.0.40
codegen_flags: <defaults>
</compile_context>

<pallas_src>
import math
import numpy as np

import jax
import jax.numpy as jnp
from jax.experimental import pallas as pl
from jax.experimental.pallas import tpu as pltpu

EPS = 1e-5


# ----------------------------------------------------------------------------
# 1. ImplicitTrans_org:  y = conv1x1(clamp?(x) * weight, K_scaled)
#    K_scaled[o, i] = dct[o, i] * (table[o] * factor[o] + bias[o])
#    Computed as y[b, :, cols] = (K_scaled * weight[b][None, :]) @ x[b, :, cols]
#    so the spatial (H*W) axis stays on the lane dimension (lane-dense stores).
# ----------------------------------------------------------------------------
def implicit_trans(x, weight, k_scaled, *, clamp=None, target_block_bytes=2 << 20):
    """x: (B, C, H, W); weight: (B, C); k_scaled: (C, C). Returns (B, C, H, W)."""
    B, C, H, W = x.shape
    HW = H * W
    x2 = x.reshape(B, C, HW)
    w3 = weight.reshape(B, 1, C)
    itemsize = x2.dtype.itemsize

    # Lane (spatial) tile: a multiple of 128 so stores are unmasked except in a
    # possibly ragged last block (output columns are independent, so padded
    # lanes just get discarded).  Full-extent block when HW is small.
    tn_cap = max(128, (target_block_bytes // (C * itemsize)) // 128 * 128)
    tn = HW if (HW <= tn_cap or HW < 128) else tn_cap
    n_col = pl.cdiv(HW, tn)

    lo, hi = clamp if clamp is not None else (None, None)

    def kernel(x_ref, w_ref, k_ref, o_ref):
        xv = x_ref[...].astype(jnp.float32)          # (C, tn)
        if clamp is not None:                        # fused torch.clamp (ty branch)
            xv = jnp.clip(xv, lo, hi)
        w = w_ref[...].astype(jnp.float32)           # (1, C)
        k = k_ref[...].astype(jnp.float32)           # (C, C) [out, in]
        kw = k * w                                   # fold per-(b, in-ch) weight into K
        y = jnp.dot(kw, xv, preferred_element_type=jnp.float32)
        o_ref[...] = y.astype(o_ref.dtype)

    block_bytes = C * tn * itemsize
    vmem_limit = int(min(48 << 20, max(6 * block_bytes + (1 << 20), 8 << 20)))
    cost = pl.CostEstimate(
        flops=2 * B * C * C * HW + 2 * B * C * HW,
        transcendentals=0,
        bytes_accessed=(2 * B * C * HW + B * C + C * C) * itemsize,
    )

    out = pl.pallas_call(
        kernel,
        out_shape=jax.ShapeDtypeStruct((B, C, HW), x.dtype),
        grid_spec=pltpu.PrefetchScalarGridSpec(
            num_scalar_prefetch=0,
            grid=(B, n_col),
            in_specs=[
                pl.BlockSpec((None, C, tn), lambda b, j: (b, 0, j)),
                pl.BlockSpec((None, 1, C), lambda b, j: (b, 0, 0)),
                pl.BlockSpec((C, C), lambda b, j: (0, 0)),
            ],
            out_specs=pl.BlockSpec((None, C, tn), lambda b, j: (b, 0, j)),
        ),
        compiler_params=pltpu.CompilerParams(
            dimension_semantics=("parallel", "parallel"),
            vmem_limit_bytes=vmem_limit,
        ),
        cost_estimate=cost,
    )(x2, w3, k_scaled)
    return out.reshape(B, C, H, W)


def _dct_basis_kernel():
    # Matches ImplicitTrans_org.__init__ exactly (64x64 DCT basis, 1x1 conv).
    kernel = np.zeros((64, 64), dtype=np.float32)
    r1 = math.sqrt(1.0 / 8)
    r2 = math.sqrt(2.0 / 8)
    for i in range(8):
        _u = 2 * i + 1
        for j in range(8):
            _v = 2 * j + 1
            index = i * 8 + j
            for u in range(8):
                for v in range(8):
                    index2 = u * 8 + v
                    t = math.cos(_u * u * math.pi / 16) * math.cos(_v * v * math.pi / 16)
                    t = t * r1 if u == 0 else t * r2
                    t = t * r1 if v == 0 else t * r2
                    kernel[index, index2] = t
    return kernel


_JPEG_TABLE = np.array(
    [16, 16, 16, 16, 17, 18, 21, 24, 16, 16, 16, 16, 17, 19, 22, 25,
     16, 16, 17, 18, 20, 22, 25, 29, 16, 16, 18, 21, 24, 27, 31, 36,
     17, 17, 20, 24, 30, 35, 41, 47, 18, 19, 22, 27, 35, 44, 54, 65,
     21, 22, 25, 31, 41, 54, 70, 88, 24, 25, 29, 36, 47, 65, 88, 115],
    dtype=np.float32) / 255.0
_DCT_KERNEL = _dct_basis_kernel()


def make_implicit_kernel(factor, bias):
    """K_scaled[o, i] = dct[o, i] * (table[o] * factor[o] + bias[o])."""
    table = jnp.asarray(_JPEG_TABLE) * factor + bias          # (64,)
    return jnp.asarray(_DCT_KERNEL) * table[:, None]          # (64, 64)


# ----------------------------------------------------------------------------
# 2. BiasFree LayerNorm:  out = x / sqrt(var(x, -1, unbiased=False) + eps) * w
#    (x is NOT mean-centered in the output — matches the PyTorch module)
# ----------------------------------------------------------------------------
def _biasfree_ln_kernel(x_ref, w_ref, o_ref):
    x = x_ref[...].astype(jnp.float32)               # (tm, C)
    inv_c = 1.0 / x.shape[-1]
    s1 = jnp.sum(x, axis=-1, keepdims=True)          # two independent XLU reductions
    s2 = jnp.sum(x * x, axis=-1, keepdims=True)
    mu = s1 * inv_c
    var = jnp.maximum(s2 * inv_c - mu * mu, 0.0)     # one-pass; clamp cancellation
    inv = jax.lax.rsqrt(var + EPS)                   # EUP
    w = w_ref[...].astype(jnp.float32)               # (1, C) broadcast over rows
    o_ref[...] = (x * inv * w).astype(o_ref.dtype)


def biasfree_layernorm(x, weight, *, target_block_bytes=4 << 20,
                       vmem_budget_bytes=16 << 20):
    """x: (..., C); weight: (C,). Returns same shape/dtype as x."""
    orig_shape = x.shape
    C = orig_shape[-1]
    rows = int(np.prod(orig_shape[:-1]))
    x2 = x.reshape(rows, C)
    w2 = weight.reshape(1, C)
    itemsize = x2.dtype.itemsize

    # Row tile: large enough to amortize the ~0.35us per-grid-step overhead,
    # capped (in f32 terms) so double-buffered in+out blocks stay inside a
    # budget that is safe on v7x's smaller (64 MiB physical) VMEM.
    tm = max(8, target_block_bytes // (C * itemsize))
    tm = min(tm, max(8, vmem_budget_bytes // (4 * C * 4)))
    if tm >= rows:
        tm = rows                        # single full block (always legal)
    else:
        tm = max(8, (tm // 8) * 8)       # sublane-aligned partial blocks

    # Ragged last block instead of pad+slice: OOB rows are computed on padding
    # and their stores discarded — no extra HBM copy of x or the output.
    n_blocks = pl.cdiv(rows, tm)

    block_bytes = tm * C * itemsize
    compute_bytes = tm * C * 4
    vmem_limit = int(min(48 << 20,
                         max(4 * block_bytes + 4 * compute_bytes, 8 << 20)))

    cost = pl.CostEstimate(
        flops=6 * rows * C,
        transcendentals=rows,
        bytes_accessed=(2 * rows * C + C) * itemsize,
    )

    out = pl.pallas_call(
        _biasfree_ln_kernel,
        out_shape=jax.ShapeDtypeStruct((rows, C), x.dtype),
        grid_spec=pltpu.PrefetchScalarGridSpec(
            num_scalar_prefetch=0,
            grid=(n_blocks,),
            in_specs=[
                pl.BlockSpec((tm, C), lambda i: (i, 0)),
                pl.BlockSpec((1, C), lambda i: (0, 0)),
            ],
            out_specs=pl.BlockSpec((tm, C), lambda i: (i, 0)),
        ),
        compiler_params=pltpu.CompilerParams(
            dimension_semantics=("parallel",),    # shards over v7x's 2 TCs
            vmem_limit_bytes=vmem_limit,
        ),
        cost_estimate=cost,
    )(x2, w2)
    return out.reshape(orig_shape)


# ----------------------------------------------------------------------------
# 3. GetWeight MLP: relu(relu(relu(y @ W1) @ W2) @ W3), weights pre-transposed.
# ----------------------------------------------------------------------------
def _gw_fc_kernel(y_ref, w1_ref, w2_ref, w3_ref, o_ref):
    h = y_ref[...].astype(jnp.float32)
    h = jnp.maximum(jnp.dot(h, w1_ref[...], preferred_element_type=jnp.float32), 0.0)
    h = jnp.maximum(jnp.dot(h, w2_ref[...], preferred_element_type=jnp.float32), 0.0)
    h = jnp.maximum(jnp.dot(h, w3_ref[...], preferred_element_type=jnp.float32), 0.0)
    o_ref[...] = h.astype(o_ref.dtype)


def gw_fc(y, w1_t, w2_t, w3_t):
    B, C = y.shape
    return pl.pallas_call(
        _gw_fc_kernel,
        out_shape=jax.ShapeDtypeStruct((B, C), jnp.float32),
    )(y, w1_t, w2_t, w3_t)


# ----------------------------------------------------------------------------
# JAX-composed pieces
# ----------------------------------------------------------------------------
def conv2d(x, w, b=None, *, stride=1, padding=0, dilation=1):
    # TODO(synk): 3x3 spatial convolutions are delegated to XLA (lax.conv); no
    # clean Pallas win at these shapes.
    y = jax.lax.conv_general_dilated(
        x, w,
        window_strides=(stride, stride),
        padding=((padding, padding), (padding, padding)),
        rhs_dilation=(dilation, dilation),
        dimension_numbers=("NCHW", "OIHW", "NCHW"),
    )
    if b is not None:
        y = y + b.reshape(1, -1, 1, 1)
    return y


def get_weight(p, x):
    """GetWeight: stride-2 conv -> global avg pool -> fused MLP (Pallas)."""
    y = conv2d(x, p["down_w"], p["down_b"], stride=2, padding=1)
    y = jnp.mean(y, axis=(2, 3))                     # AdaptiveAvgPool2d(1)
    return gw_fc(y, p["fc1_t"], p["fc2_t"], p["fc3_t"])   # (B, C)


def impfrequpx1_forward(params, x):
    """Forward pass of ImpFreqUpx1 (self.upscale is defined but unused)."""
    # TODO(synk): ResT (self.pyramid / self.pixel_restoration) is not defined in
    # the provided spec; identity passthrough is used for both.
    t = x
    ty = conv2d(t, params["conv1_w"], params["conv1_b"], padding=1)
    tc = conv2d(t, params["conv2_w"], params["conv2_b"], padding=2, dilation=2)

    ty_weight = get_weight(params["gw_y"], t)
    k1 = make_implicit_kernel(params["it1_factor"], params["it1_bias"])
    ty = implicit_trans(ty, ty_weight, k1, clamp=(-0.5, 0.5))   # clamp fused

    tc_weight = get_weight(params["gw_c"], t)
    k2 = make_implicit_kernel(params["it2_factor"], params["it2_bias"])
    tc = implicit_trans(tc, tc_weight, k2, clamp=None)

    tp = conv2d(t, params["conv3_w"], params["conv3_b"], padding=1)

    td = jnp.concatenate([ty, tc], axis=1)
    td = conv2d(td, params["conv4_w"], params["conv4_b"], padding=1)

    y = td + tp
    return x + 0.1 * y


def init_params(key, C=64):
    ks = jax.random.split(key, 6)

    def conv_w(k, out_c, in_c, kh, kw):
        return (1.0 / math.sqrt(in_c * kh * kw)) * jax.random.normal(
            k, (out_c, in_c, kh, kw), jnp.float32)

    def lin_w(k, in_f, out_f):          # stored pre-transposed: (in, out)
        return (1.0 / math.sqrt(in_f)) * jax.random.normal(
            k, (in_f, out_f), jnp.float32)

    def gw(k):
        k0, k1, k2, k3 = jax.random.split(k, 4)
        return {
            "down_w": conv_w(k0, C, C, 3, 3),
            "down_b": jnp.zeros((C,), jnp.float32),
            "fc1_t": lin_w(k1, C, 4 * C),
            "fc2_t": lin_w(k2, 4 * C, 2 * C),
            "fc3_t": lin_w(k3, 2 * C, C),
        }

    zeros = jnp.zeros((C,), jnp.float32)
    return {
        "conv1_w": conv_w(ks[0], C, C, 3, 3), "conv1_b": zeros,
        "conv2_w": conv_w(ks[1], C, C, 3, 3), "conv2_b": zeros,
        "conv3_w": conv_w(ks[2], C, C, 3, 3), "conv3_b": zeros,
        "conv4_w": conv_w(ks[3], C, 2 * C, 3, 3), "conv4_b": zeros,
        "gw_y": gw(ks[4]),
        "gw_c": gw(ks[5]),
        "it1_factor": jnp.ones((C,), jnp.float32), "it1_bias": zeros,
        "it2_factor": jnp.ones((C,), jnp.float32), "it2_bias": zeros,
    }


if __name__ == "__main__":
    key = jax.random.PRNGKey(0)
    k_x, k_ln, k_it, k_w, k_p = jax.random.split(key, 5)

    B, C, H, W = 2, 64, 16, 16    # ImplicitTrans/GetWeight fix the module to C=64

    # --- 1) ImplicitTrans kernel vs. reference --------------------------------
    xt = 0.5 * jax.random.normal(k_it, (B, C, H, W), dtype=jnp.float32)
    wt = jax.random.uniform(k_w, (B, C), dtype=jnp.float32)
    k_s = make_implicit_kernel(jnp.ones((C,), jnp.float32), jnp.zeros((C,), jnp.float32))
    it_out = implicit_trans(xt, wt, k_s, clamp=(-0.5, 0.5))
    it_ref = jnp.einsum("oi,bihw->bohw", k_s,
                        jnp.clip(xt, -0.5, 0.5) * wt[:, :, None, None])
    assert jnp.allclose(it_out, it_ref, atol=2e-2, rtol=2e-2), "ImplicitTrans mismatch"

    # --- 2) BiasFree LayerNorm kernel (building block of HFUR's ResT blocks) ---
    x_tok = jax.random.normal(k_ln, (B, H * W, C), dtype=jnp.float32)
    ln_w = jnp.ones((C,), dtype=jnp.float32)          # module init
    ln_out = biasfree_layernorm(x_tok, ln_w)
    mu = jnp.mean(x_tok, axis=-1, keepdims=True)
    sigma = jnp.mean((x_tok - mu) ** 2, axis=-1, keepdims=True)
    ln_ref = x_tok / jnp.sqrt(sigma + EPS) * ln_w
    assert jnp.allclose(ln_out, ln_ref, atol=1e-4, rtol=1e-4), "LayerNorm mismatch"

    # Ragged-grid path: tile does not divide rows, no pad/slice HBM copies.
    ln_out_r = biasfree_layernorm(x_tok, ln_w, target_block_bytes=96 * C * 4)
    assert jnp.allclose(ln_out_r, ln_ref, atol=1e-4, rtol=1e-4), "ragged LN mismatch"

    # --- 3) Full ImpFreqUpx1 forward ------------------------------------------
    params = init_params(k_p, C)
    x = 0.1 * jax.random.normal(k_x, (B, C, H, W), dtype=jnp.float32)
    y = jax.jit(impfrequpx1_forward)(params, x)
    y = jax.block_until_ready(y)
    assert y.shape == (B, C, H, W)
    assert bool(jnp.all(jnp.isfinite(y))), "non-finite output"

    print("KERNEL_OK")
</pallas_src>

<mosaic_0001>
module attributes {stable_mosaic.version = 11 : i64} {
  func.func @kernel(%arg0: i32, %arg1: i32, %arg2: memref<1x64x256xf32, #tpu.memory_space<vmem>>, %arg3: memref<1x1x64xf32, #tpu.memory_space<vmem>>, %arg4: memref<64x64xf32, #tpu.memory_space<vmem>>, %arg5: memref<1x64x256xf32, #tpu.memory_space<vmem>>) attributes {dimension_semantics = [#tpu.dimension_semantics<parallel>, #tpu.dimension_semantics<parallel>], iteration_bounds = array<i64: 2, 1>, scalar_prefetch = 0 : i64, scratch_operands = 0 : i64, tpu.core_type = #tpu.core_type<tc>, window_params = [{transform_indices = @transform_0, window_bounds = array<i64: 1, 64, 256>}, {transform_indices = @transform_1, window_bounds = array<i64: 1, 1, 64>}, {pipeline_mode = #tpu.pipeline_mode<synchronous>, transform_indices = @transform_2, window_bounds = array<i64: 64, 64>}, {transform_indices = @transform_3, window_bounds = array<i64: 1, 64, 256>}]} {
    %c0 = arith.constant 0 : index
    %c0_0 = arith.constant 0 : index
    %c0_1 = arith.constant 0 : index
    %0 = vector.load %arg2[%c0, %c0_0, %c0_1] : memref<1x64x256xf32, #tpu.memory_space<vmem>>, vector<1x64x256xf32>
    %1 = vector.shape_cast %0 : vector<1x64x256xf32> to vector<64x256xf32>
    %cst = arith.constant -5.000000e-01 : f32
    %cst_2 = arith.constant 5.000000e-01 : f32
    %2 = vector.broadcast %cst : f32 to vector<64x256xf32>
    %3 = arith.maximumf %2, %1 : vector<64x256xf32>
    %4 = vector.broadcast %cst_2 : f32 to vector<64x256xf32>
    %5 = arith.minimumf %4, %3 : vector<64x256xf32>
    %c0_3 = arith.constant 0 : index
    %c0_4 = arith.constant 0 : index
    %c0_5 = arith.constant 0 : index
    %6 = vector.load %arg3[%c0_3, %c0_4, %c0_5] : memref<1x1x64xf32, #tpu.memory_space<vmem>>, vector<1x1x64xf32>
    %7 = vector.shape_cast %6 : vector<1x1x64xf32> to vector<1x64xf32>
    %c0_6 = arith.constant 0 : index
    %c0_7 = arith.constant 0 : index
    %8 = vector.load %arg4[%c0_6, %c0_7] : memref<64x64xf32, #tpu.memory_space<vmem>>, vector<64x64xf32>
    %9 = vector.broadcast %7 : vector<1x64xf32> to vector<64x64xf32>
    %10 = arith.mulf %8, %9 : vector<64x64xf32>
    %cst_8 = arith.constant dense<0.000000e+00> : vector<64x256xf32>
    %11 = tpu.matmul %10, %5, %cst_8 {dimension_numbers = #tpu.dot_dimension_numbers<[1], [0], [0], [1], [0, 0, 1, 1], [], []>} : vector<64x64xf32>, vector<64x256xf32>, vector<64x256xf32> -> vector<64x256xf32>
    %c0_9 = arith.constant 0 : index
    %c0_10 = arith.constant 0 : index
    %c0_11 = arith.constant 0 : index
    %12 = vector.load %arg5[%c0_9, %c0_10, %c0_11] : memref<1x64x256xf32, #tpu.memory_space<vmem>>, vector<1x64x256xf32>
    %13 = vector.shape_cast %12 : vector<1x64x256xf32> to vector<64x256xf32>
    %14 = vector.shape_cast %11 : vector<64x256xf32> to vector<1x64x256xf32>
    tpu.vector_store %arg5[%c0_9, %c0_10, %c0_11], %14 {strides = array<i32>} : memref<1x64x256xf32, #tpu.memory_space<vmem>>, vector<1x64x256xf32>,
    return
  }
  func.func @transform_0(%arg0: i32, %arg1: i32) -> (i32, i32, i32) {
    %c0_i32 = arith.constant 0 : i32
    %c0_i32_0 = arith.constant 0 : i32
    return %arg0, %c0_i32, %arg1 : i32, i32, i32
  }
  func.func @transform_1(%arg0: i32, %arg1: i32) -> (i32, i32, i32) {
    %c0_i32 = arith.constant 0 : i32
    %c0_i32_0 = arith.constant 0 : i32
    %c0_i32_1 = arith.constant 0 : i32
    return %arg0, %c0_i32, %c0_i32_0 : i32, i32, i32
  }
  func.func @transform_2(%arg0: i32, %arg1: i32) -> (i32, i32) {
    %c0_i32 = arith.constant 0 : i32
    %c0_i32_0 = arith.constant 0 : i32
    %c0_i32_1 = arith.constant 0 : i32
    return %c0_i32, %c0_i32_0 : i32, i32
  }
  func.func @transform_3(%arg0: i32, %arg1: i32) -> (i32, i32, i32) {
    %c0_i32 = arith.constant 0 : i32
    %c0_i32_0 = arith.constant 0 : i32
    return %arg0, %c0_i32, %arg1 : i32, i32, i32
  }
}

</mosaic_0001>

<llo_original>
// kernel: tpu_custom_call.1
$region0: #{tpu_custom_call.1}
  #allocation0 [shape = 'u32[]', space=smem, size = 0x4, offset = 0x4, fixed_abs, tag = 'smem constant byte address 0x4 - core index']
  #allocation1 [shape = 'u32[144,128]{1,0:T(1,128)}', space=vmem, size = 0x12000, scoped, tag = 'internal scratch']
  %s0 = inlined_call_operand.hbm [shape: f32[2,64,256], index: 0, kind: input, shape index: {}]
  %s1 = inlined_call_operand.hbm [shape: f32[2,1,64], index: 1, kind: input, shape index: {}]
  %s2 = inlined_call_operand.hbm [shape: f32[64,64], index: 2, kind: input, shape index: {}]
  %s3 = inlined_call_operand.hbm [shape: f32[2,64,256], index: 3, kind: output, shape index: {}]
  %s4 = sld [smem:[#allocation0]]
  $region57: #{tpu_custom_call.1} parent=0
    _
  %s6 = ssub.s32 1, %s4
  %s7 = scalar_select 0, %s6, %s4
  $region1: #{tpu_custom_call.1} parent=0
    #allocation2 [shape = 'u8[131072]{0}', space=vmem, size = 0x20000, scoped, tag = 'input window, operand 0']
    #allocation3 [shape = 's32[2]{0}', space=sflag, size = 0x8, scoped, tag = 'scoped memory for tpu_custom_call.1']
    #allocation4 [shape = 's32[2]{0}', space=sflag, size = 0x8, scoped, tag = 'scoped memory for tpu_custom_call.1']
    #allocation5 [shape = 'u8[1024]{0}', space=vmem, size = 0x400, scoped, tag = 'input window, operand 1']
    #allocation6 [shape = 's32[2]{0}', space=sflag, size = 0x8, scoped, tag = 'scoped memory for tpu_custom_call.1']
    #allocation7 [shape = 'u8[32768]{0}', space=vmem, size = 0x8000, scoped, tag = 'input window, operand 2, single buffered']
    #allocation8 [shape = 'u8[131072]{0}', space=vmem, size = 0x20000, scoped, tag = 'output window, operand 0']
    %8 = vsyncpa [#allocation3], 0
    %s9 = scalar_lea.sflag [#allocation3], 1
    %10 = vsyncpa %s9, 0
    %11 = vsyncpa [#allocation6], 0
    %s12 = scalar_lea.sflag [#allocation6], 1
    %13 = vsyncpa %s12, 0
    %14 = vsyncpa [#allocation4], 0
    %s15 = scalar_lea.sflag [#allocation4], 1
    %16 = vsyncpa %s15, 0
    loop: start=0, step=1, limit=4
    $region2: #{tpu_custom_call.1} parent=1 // loop_pre_header
      _
    $region3: #{tpu_custom_call.1} parent=1 // loop_header
      %s18 = sphi 0, %s22
      %p19 = scmp.ge.s32.totalorder %s18, 4
      %s25 = sphi 0, %s37
      %s26 = sphi 0, %s33
      %s27 = sphi 0, %s25
      %s28 = sphi 0, %s26
      %s29 = sphi 0, %s27
      %s30 = sphi 0, %s28
      %s42 = sphi 0, %s44
      %s45 = sphi 0, %s42
      %s46 = sphi 0, %s45
      %s62 = sphi 0, %s46
      %s68 = sphi 0, %s70
      %s71 = sphi 0, %s68
      %s72 = sphi 0, %s71
      %s88 = sphi 0, %s72
      %s92 = sphi 0, %s92
      %s94 = sphi 0, %s92
      %s95 = sphi 0, %s94
      %s109 = sphi 0, %s95
      %s117 = sphi 0, %s119
      %s120 = sphi 0, %s117
      %s121 = sphi 0, %s120
      %s137 = sphi 0, %s121
    $region4: #{tpu_custom_call.1} parent=1 // loop_header_branch
      %21 = sbr.rel (%p19) target = $region8
    $region5: #{tpu_custom_call.1} parent=1 // loop_body
      %s23 = ssub.s32 %s18, 1
      %s24 = ssub.s32 %s18, 2
      %s31 = sadd.s32 1, %s26
      %p32 = scmp.ge.s32.totalorder %s31, 1
      %s33 = scalar_select %p32, 0, %s31
      %s34 = sadd.s32 1, %s25
      %s35 = scalar_select %p32, %s34, %s25
      %p36 = scmp.ge.s32.totalorder %s35, 2
      %s37 = scalar_select %p36, 0, %s35
      %s38 = ssub.s32 %s25, %s37
      %s39 = ssub.s32 %s26, %s33
      %s40 = sor.u32 %s38, %s39
      %p41 = scmp.eq.s32.totalorder %s40, 0
      %s43 = sadd.s32 %s42, 1
      %s44 = scalar_select %p41, %s42, %s43
      %p47 = pneg %p41
      %p48 = scmp.eq.s32.totalorder %s18, 1
      %p49 = por %p47, %p48
      %p50 = scmp.ne.s32.totalorder %s42, %s45
      %p51 = scmp.eq.s32.totalorder %s18, 0
      %p52 = por %p50, %p51
      %p53 = scmp.ne.s32.totalorder %s42, %s45
      %p54 = scmp.eq.s32.totalorder %s23, 1
      %p55 = por %p53, %p54
      %p56 = scmp.ne.s32.totalorder %s45, %s46
      %p57 = scmp.eq.s32.totalorder %s23, 0
      %p58 = por %p56, %p57
      %p59 = scmp.ne.s32.totalorder %s45, %s46
      %p60 = scmp.eq.s32.totalorder %s24, 1
      %p61 = por %p59, %p60
      %p63 = scmp.ne.s32.totalorder %s46, %s62
      %p64 = scmp.eq.s32.totalorder %s24, 0
      %p65 = por %p63, %p64
      %s66 = ssub.s32 %s25, %s37
      %p67 = scmp.eq.s32.totalorder %s66, 0
      %s69 = sadd.s32 %s68, 1
      %s70 = scalar_select %p67, %s68, %s69
      %p73 = pneg %p67
      %p74 = scmp.eq.s32.totalorder %s18, 1
      %p75 = por %p73, %p74
      %p76 = scmp.ne.s32.totalorder %s68, %s71
      %p77 = scmp.eq.s32.totalorder %s18, 0
      %p78 = por %p76, %p77
      %p79 = scmp.ne.s32.totalorder %s68, %s71
      %p80 = scmp.eq.s32.totalorder %s23, 1
      %p81 = por %p79, %p80
      %p82 = scmp.ne.s32.totalorder %s71, %s72
      %p83 = scmp.eq.s32.totalorder %s23, 0
      %p84 = por %p82, %p83
      %p85 = scmp.ne.s32.totalorder %s71, %s72
      %p86 = scmp.eq.s32.totalorder %s24, 1
      %p87 = por %p85, %p86
      %p89 = scmp.ne.s32.totalorder %s72, %s88
      %p90 = scmp.eq.s32.totalorder %s24, 0
      %p91 = por %p89, %p90
      %s93 = sadd.s32 %s92, 1
      %p96 = scmp.eq.s32.totalorder %s18, 1
      %p97 = scmp.ne.s32.totalorder %s92, %s94
      %p98 = scmp.eq.s32.totalorder %s18, 0
      %p99 = por %p97, %p98
      %p100 = scmp.ne.s32.totalorder %s92, %s94
      %p101 = scmp.eq.s32.totalorder %s23, 1
      %p102 = por %p100, %p101
      %p103 = scmp.ne.s32.totalorder %s94, %s95
      %p104 = scmp.eq.s32.totalorder %s23, 0
      %p105 = por %p103, %p104
      %p106 = scmp.ne.s32.totalorder %s94, %s95
      %p107 = scmp.eq.s32.totalorder %s24, 1
      %p108 = por %p106, %p107
      %p110 = scmp.ne.s32.totalorder %s95, %s109
      %p111 = scmp.eq.s32.totalorder %s24, 0
      %p112 = por %p110, %p111
      %s113 = ssub.s32 %s25, %s37
      %s114 = ssub.s32 %s26, %s33
      %s115 = sor.u32 %s113, %s114
      %p116 = scmp.eq.s32.totalorder %s115, 0
      %s118 = sadd.s32 %s117, 1
      %s119 = scalar_select %p116, %s117, %s118
      %p122 = pneg %p116
      %p123 = scmp.eq.s32.totalorder %s18, 1
      %p124 = por %p122, %p123
      %p125 = scmp.ne.s32.totalorder %s117, %s120
      %p126 = scmp.eq.s32.totalorder %s18, 0
      %p127 = por %p125, %p126
      %p128 = scmp.ne.s32.totalorder %s117, %s120
      %p129 = scmp.eq.s32.totalorder %s23, 1
      %p130 = por %p128, %p129
      %p131 = scmp.ne.s32.totalorder %s120, %s121
      %p132 = scmp.eq.s32.totalorder %s23, 0
      %p133 = por %p131, %p132
      %p134 = scmp.ne.s32.totalorder %s120, %s121
      %p135 = scmp.eq.s32.totalorder %s24, 1
      %p136 = por %p134, %p135
      %p138 = scmp.ne.s32.totalorder %s121, %s137
      %p139 = scmp.eq.s32.totalorder %s24, 0
      %p140 = por %p138, %p139
      %p141 = scmp.le.s32.totalorder 1, %s18
      %p142 = scmp.lt.s32.totalorder %s18, 3
      %p143 = pnand %p141, %p142
      %p144 = pneg %p143
      // Predicated region
      $region9: #{tpu_custom_call.1} parent=5 // pred_check
        _
      $region10: #{tpu_custom_call.1} parent=5 // pred_check_branch
        %146 = sbr.rel (%p143) target = $region12
      $region11: #{tpu_custom_call.1} parent=5 // pred_region
        %s147 = ssub.s32 %s18, 1
        // Predicated region
        $region13: #{tpu_custom_call.1} parent=11 // pred_check
          %p148 = pneg %p105
        $region14: #{tpu_custom_call.1} parent=11 // pred_check_branch
          %150 = sbr.rel (%p148) target = $region16
        $region15: #{tpu_custom_call.1} parent=11 // pred_region
          %s152 = ssub.s32 1024, 1024
          %153 = vsyncadd [#allocation6], %s152
          %s154 = sshll.u32 [#allocation7], 4
          %s155 = int_to_ptr.vmem [resolvable:$true] %s154
          %160 = dma.hbm_to_vmem [thread:$0]  %s2, 1024, %s155, [#allocation6], 128, 128, 8
        $region16: #{tpu_custom_call.1} parent=11 // pred_fallthru
          _
      $region12: #{tpu_custom_call.1} parent=5 // pred_fallthru
        _
      %p161 = scmp.lt.s32.totalorder %s18, 2
      // Predicated region
      $region17: #{tpu_custom_call.1} parent=5 // pred_check
        %p162 = pneg %p161
      $region18: #{tpu_custom_call.1} parent=5 // pred_check_branch
        %164 = sbr.rel (%p162) target = $region20
      $region19: #{tpu_custom_call.1} parent=5 // pred_region
        // Predicated region
        $region21: #{tpu_custom_call.1} parent=19 // pred_check
          %p165 = pneg %p52
        $region22: #{tpu_custom_call.1} parent=19 // pred_check_branch
          %167 = sbr.rel (%p165) target = $region24
        $region23: #{tpu_custom_call.1} parent=19 // pred_region
          %s168 = sand.u32 %s42, 1
          %s169 = scalar_lea.sflag [#allocation3], %s168
          %s170 = sand.u32 %s42, 1
          %s171 = smul.addr %s170, 128
          %s172 = scalar_lea.vmem [#allocation2], %s171
          %s173 = smul.u32 2, %s26
          %s175 = ssub.s32 2048, 2048
          %176 = vsyncadd %s169, %s175
          %s177 = smul.addr %s25, 16
          %s178 = sadd.s32 %s173, %s177
          %s179 = smul.addr %s178, 128
          %s180 = scalar_lea.hbm %s0, %s179
          %s181 = sshll.u32 %s172, 4
          %s182 = int_to_ptr.vmem [resolvable:$true] %s181
          %187 = dma.hbm_to_vmem [thread:$0]  %s180, 2048, %s182, %s169, 256, 256, 16
        $region24: #{tpu_custom_call.1} parent=19 // pred_fallthru
          _
        // Predicated region
        $region25: #{tpu_custom_call.1} parent=19 // pred_check
          %p188 = pneg %p78
        $region26: #{tpu_custom_call.1} parent=19 // pred_check_branch
          %190 = sbr.rel (%p188) target = $region28
        $region27: #{tpu_custom_call.1} parent=19 // pred_region
          %s191 = sand.u32 %s18, 1
          %s192 = scalar_lea.sflag [#allocation6], %s191
          %s193 = sand.u32 %s68, 1
          %s194 = scalar_lea.vmem [#allocation5], %s193
          %s196 = ssub.s32 16, 16
          %197 = vsyncadd %s192, %s196
          %s198 = smul.addr %s25, 16
          %s199 = scalar_lea.hbm %s1, %s198
          %s201 = sshll.u32 %s194, 4
          %s202 = int_to_ptr.vmem [resolvable:$true] %s201
          %204 = dma.hbm_to_vmem [thread:$0]  %s199, 16, %s202, %s192
        $region28: #{tpu_custom_call.1} parent=19 // pred_fallthru
          _
      $region20: #{tpu_custom_call.1} parent=5 // pred_fallthru
        _
      %p205 = scmp.le.s32.totalorder 1, %s18
      %p206 = scmp.lt.s32.totalorder %s18, 3
      %p207 = pnand %p205, %p206
      %p208 = pneg %p207
      // Predicated region
      $region29: #{tpu_custom_call.1} parent=5 // pred_check
        _
      $region30: #{tpu_custom_call.1} parent=5 // pred_check_branch
        %210 = sbr.rel (%p207) target = $region32
      $region31: #{tpu_custom_call.1} parent=5 // pred_region
        %s211 = ssub.s32 %s18, 1
        %s212 = sand.u32 %s45, 1
        %s213 = scalar_lea.sflag [#allocation3], %s212
        %s214 = sand.u32 %s45, 1
        %s215 = smul.addr %s214, 128
        %s216 = scalar_lea.vmem [#allocation2], %s215
        // Predicated region
        $region33: #{tpu_custom_call.1} parent=31 // pred_check
          %p217 = pneg %p58
        $region34: #{tpu_custom_call.1} parent=31 // pred_check_branch
          %219 = sbr.rel (%p217) target = $region36
        $region35: #{tpu_custom_call.1} parent=31 // pred_region
          %220 = dma.done %s213, 2048
        $region36: #{tpu_custom_call.1} parent=31 // pred_fallthru
          _
        %s221 = sand.u32 %s23, 1
        %s222 = scalar_lea.sflag [#allocation6], %s221
        %s223 = sand.u32 %s71, 1
        %s224 = scalar_lea.vmem [#allocation5], %s223
        // Predicated region
        $region37: #{tpu_custom_call.1} parent=31 // pred_check
          %p225 = pneg %p84
        $region38: #{tpu_custom_call.1} parent=31 // pred_check_branch
          %227 = sbr.rel (%p225) target = $region40
        $region39: #{tpu_custom_call.1} parent=31 // pred_region
          %228 = dma.done %s222, 16
        $region40: #{tpu_custom_call.1} parent=31 // pred_fallthru
          _
        // Predicated region
        $region41: #{tpu_custom_call.1} parent=31 // pred_check
          %p229 = pneg %p105
        $region42: #{tpu_custom_call.1} parent=31 // pred_check_branch
          %231 = sbr.rel (%p229) target = $region44
        $region43: #{tpu_custom_call.1} parent=31 // pred_region
          %232 = dma.done [#allocation6], 1024
        $region44: #{tpu_custom_call.1} parent=31 // pred_fallthru
          _
        %s233 = sand.u32 %s45, 1
        %s234 = scalar_lea.sflag [#allocation3], %s233
        %s235 = sand.u32 %s45, 1
        %s236 = smul.addr %s235, 128
        %s237 = scalar_lea.vmem [#allocation2], %s236
        %p238 = pneg %p58
        %p239 = pneg %p55
        %s240 = sand.u32 %s23, 1
        %s241 = scalar_lea.sflag [#allocation6], %s240
        %s242 = sand.u32 %s71, 1
        %s243 = scalar_lea.vmem [#allocation5], %s242
        %p244 = pneg %p84
        %p245 = pneg %p81
        %p246 = pneg %p105
        %p247 = pneg %p102
        %p248 = pneg %p133
        %p249 = pneg %p130
        %s250 = sand.u32 %s120, 1
        %s251 = scalar_lea.sflag [#allocation4], %s250
        %s252 = sand.u32 %s120, 1
        %s253 = smul.addr %s252, 128
        %s254 = scalar_lea.vmem [#allocation8], %s253
        %s255 = smul.u32 2, %s28
        %s256 = smul.u32 2, %s28
        %v257 = vld [vmem:[%s216] sm:$0xff]
        %v258 = vld [vmem:[%s216 + $0x8] sm:$0xff]
        %v259 = vld [vmem:[%s216 + $0x10] sm:$0xff]
        %v260 = vld [vmem:[%s216 + $0x18] sm:$0xff]
        %v261 = vld [vmem:[%s216 + $0x20] sm:$0xff]
        %v262 = vld [vmem:[%s216 + $0x28] sm:$0xff]
        %v263 = vld [vmem:[%s216 + $0x30] sm:$0xff]
        %v264 = vld [vmem:[%s216 + $0x38] sm:$0xff]
        %v265 = vld [vmem:[%s216 + $0x40] sm:$0xff]
        %v266 = vld [vmem:[%s216 + $0x48] sm:$0xff]
        %v267 = vld [vmem:[%s216 + $0x50] sm:$0xff]
        %v268 = vld [vmem:[%s216 + $0x58] sm:$0xff]
        %v269 = vld [vmem:[%s216 + $0x60] sm:$0xff]
        %v270 = vld [vmem:[%s216 + $0x68] sm:$0xff]
        %v271 = vld [vmem:[%s216 + $0x70] sm:$0xff]
        %v272 = vld [vmem:[%s216 + $0x78] sm:$0xff]
        %v273 = vmax.f32 %v257, -0.5
        %v274 = vmax.f32 %v258, -0.5
        %v275 = vmax.f32 %v259, -0.5
        %v276 = vmax.f32 %v260, -0.5
        %v277 = vmax.f32 %v261, -0.5
        %v278 = vmax.f32 %v262, -0.5
        %v279 = vmax.f32 %v263, -0.5
        %v280 = vmax.f32 %v264, -0.5
        %v281 = vmax.f32 %v265, -0.5
        %v282 = vmax.f32 %v266, -0.5
        %v283 = vmax.f32 %v267, -0.5
        %v284 = vmax.f32 %v268, -0.5
        %v285 = vmax.f32 %v269, -0.5
        %v286 = vmax.f32 %v270, -0.5
        %v287 = vmax.f32 %v271, -0.5
        %v288 = vmax.f32 %v272, -0.5
        %v289 = vmin.f32 %v273, 0.5
        %v290 = vmin.f32 %v274, 0.5
        %v291 = vmin.f32 %v275, 0.5
        %v292 = vmin.f32 %v276, 0.5
        %v293 = vmin.f32 %v277, 0.5
        %v294 = vmin.f32 %v278, 0.5
        %v295 = vmin.f32 %v279, 0.5
        %v296 = vmin.f32 %v280, 0.5
        %v297 = vmin.f32 %v281, 0.5
        %v298 = vmin.f32 %v282, 0.5
        %v299 = vmin.f32 %v283, 0.5
        %v300 = vmin.f32 %v284, 0.5
        %v301 = vmin.f32 %v285, 0.5
        %v302 = vmin.f32 %v286, 0.5
        %v303 = vmin.f32 %v287, 0.5
        %v304 = vmin.f32 %v288, 0.5
        %v305 = vld [vmem:[%s224] sm:$0x1]
        %v306 = vld [vmem:[#allocation7] sm:$0xff]
        %v307 = vld [vmem:[#allocation7 + $0x8] sm:$0xff]
        %v308 = vld [vmem:[#allocation7 + $0x10] sm:$0xff]
        %v309 = vld [vmem:[#allocation7 + $0x18] sm:$0xff]
        %v310 = vld [vmem:[#allocation7 + $0x20] sm:$0xff]
        %v311 = vld [vmem:[#allocation7 + $0x28] sm:$0xff]
        %v312 = vld [vmem:[#allocation7 + $0x30] sm:$0xff]
        %v313 = vld [vmem:[#allocation7 + $0x38] sm:$0xff]
        %v315 = vlaneseq
        %v316 = vshrl.u32 %v315, 7
        %v317 = vsub.s32 0, %v316
        %v318 = vrot.slane %v305, %v317
        %v320 = vmul.f32 %v306, %v318
        %v321 = vmul.f32 %v307, %v318
        %v322 = vmul.f32 %v308, %v318
        %v323 = vmul.f32 %v309, %v318
        %v324 = vmul.f32 %v310, %v318
        %v325 = vmul.f32 %v311, %v318
        %v326 = vmul.f32 %v312, %v318
        %v327 = vmul.f32 %v313, %v318
        %vm328 = vcmask 523264
        %v330 = vsel %vm328, %v320, 0
        %v333 = vsel %vm328, %v321, 0
        %v336 = vsel %vm328, %v322, 0
        %v339 = vsel %vm328, %v323, 0
        %v342 = vsel %vm328, %v324, 0
        %v345 = vsel %vm328, %v325, 0
        %v348 = vsel %vm328, %v326, 0
        %v351 = vsel %vm328, %v327, 0
        %353 = vmatprep.subr.mxu0 0.0
        %354 = vmatpush1.msra.mxu0 0.0
        %355 = vmatprep.subr.mxu0 0.0
        %356 = vmatpush1.msra.mxu0 0.0
        %357 = vmatprep.subr.mxu0 0.0
        %358 = vmatpush1.msra.mxu0 0.0
        %359 = vmatprep.subr.mxu0 0.0
        %360 = vmatpush1.msra.mxu0 0.0
        %361 = vmatprep.subr.mxu0 0.0
        %362 = vmatpush1.msra.mxu0 0.0
        %363 = vmatprep.subr.mxu0 0.0
        %364 = vmatpush1.msra.mxu0 0.0
        %365 = vmatprep.subr.mxu0 0.0
        %366 = vmatpush1.msra.mxu0 0.0
        %367 = vmatprep.subr.mxu0 0.0
        %368 = vmatpush1.msra.mxu0 0.0
        %369 = vmatprep.subr.mxu0 %v304
        %370 = vmatpush1.msra.mxu0 %v303
        %371 = vmatprep.subr.mxu0 %v302
        %372 = vmatpush1.msra.mxu0 %v301
        %373 = vmatprep.subr.mxu0 %v300
        %374 = vmatpush1.msra.mxu0 %v299
        %375 = vmatprep.subr.mxu0 %v298
        %376 = vmatpush1.msra.mxu0 %v297
        %377 = vmatprep.subr.mxu0 %v296
        %378 = vmatpush1.msra.mxu0 %v295
        %379 = vmatprep.subr.mxu0 %v294
        %380 = vmatpush1.msra.mxu0 %v293
        %381 = vmatprep.subr.mxu0 %v292
        %382 = vmatpush1.msra.mxu0 %v291
        %383 = vmatprep.subr.mxu0 %v290
        %384 = vmatpush1.msra.mxu0 %v289
        %385 = vmatprep.subr.mxu0 0.0
        %386 = vmatpush2.msra.mxu0 0.0
        %387 = vmatprep.subr.mxu0 0.0
        %388 = vmatpush2.msra.mxu0 0.0
        %389 = vmatprep.subr.mxu0 0.0
        %390 = vmatpush2.msra.mxu0 0.0
        %391 = vmatprep.subr.mxu0 0.0
        %392 = vmatpush2.msra.mxu0 0.0
        %393 = vmatprep.subr.mxu0 0.0
        %394 = vmatpush2.msra.mxu0 0.0
        %395 = vmatprep.subr.mxu0 0.0
        %396 = vmatpush2.msra.mxu0 0.0
        %397 = vmatprep.subr.mxu0 0.0
        %398 = vmatpush2.msra.mxu0 0.0
        %399 = vmatprep.subr.mxu0 0.0
        %400 = vmatpush2.msra.mxu0 0.0
        %401 = vmatprep.subr.mxu0 0.0
        %402 = vmatpush2.msra.mxu0 0.0
        %403 = vmatprep.subr.mxu0 0.0
        %404 = vmatpush2.msra.mxu0 0.0
        %405 = vmatprep.subr.mxu0 0.0
        %406 = vmatpush2.msra.mxu0 0.0
        %407 = vmatprep.subr.mxu0 0.0
        %408 = vmatpush2.msra.mxu0 0.0
        %409 = vmatprep.subr.mxu0 0.0
        %410 = vmatpush2.msra.mxu0 0.0
        %411 = vmatprep.subr.mxu0 0.0
        %412 = vmatpush2.msra.mxu0 0.0
        %413 = vmatprep.subr.mxu0 0.0
        %414 = vmatpush2.msra.mxu0 0.0
        %415 = vmatprep.subr.mxu0 0.0
        %416 = vmatpush2.msra.mxu0 0.0
        %417 = vmatprep.mubr.f32.mxu0 0.0
        %418 = vmatmul.mubr.f32.gmra.mxu0 %v330
        %v419 = vpop.f32.mrf.mxu0
        %v420 = vadd.f32 0.0, %v419
        %v421 = vpop.f32.mrf.mxu0
        %v422 = vadd.f32 0.0, %v421
        %423 = vmatprep.mubr.f32.mxu0 0.0
        %424 = vmatmul.mubr.f32.gmra.mxu0 %v333
        %v425 = vpop.f32.mrf.mxu0
        %v426 = vadd.f32 0.0, %v425
        %v427 = vpop.f32.mrf.mxu0
        %v428 = vadd.f32 0.0, %v427
        %429 = vmatprep.mubr.f32.mxu0 0.0
        %430 = vmatmul.mubr.f32.gmra.mxu0 %v336
        %v431 = vpop.f32.mrf.mxu0
        %v432 = vadd.f32 0.0, %v431
        %v433 = vpop.f32.mrf.mxu0
        %v434 = vadd.f32 0.0, %v433
        %435 = vmatprep.mubr.f32.mxu0 0.0
        %436 = vmatmul.mubr.f32.gmra.mxu0 %v339
        %v437 = vpop.f32.mrf.mxu0
        %v438 = vadd.f32 0.0, %v437
        %v439 = vpop.f32.mrf.mxu0
        %v440 = vadd.f32 0.0, %v439
        %441 = vmatprep.mubr.f32.mxu0 0.0
        %442 = vmatmul.mubr.f32.gmra.mxu0 %v342
        %v443 = vpop.f32.mrf.mxu0
        %v444 = vadd.f32 0.0, %v443
        %v445 = vpop.f32.mrf.mxu0
        %v446 = vadd.f32 0.0, %v445
        %447 = vmatprep.mubr.f32.mxu0 0.0
        %448 = vmatmul.mubr.f32.gmra.mxu0 %v345
        %v449 = vpop.f32.mrf.mxu0
        %v450 = vadd.f32 0.0, %v449
        %v451 = vpop.f32.mrf.mxu0
        %v452 = vadd.f32 0.0, %v451
        %453 = vmatprep.mubr.f32.mxu0 0.0
        %454 = vmatmul.mubr.f32.gmra.mxu0 %v348
        %v455 = vpop.f32.mrf.mxu0
        %v456 = vadd.f32 0.0, %v455
        %v457 = vpop.f32.mrf.mxu0
        %v458 = vadd.f32 0.0, %v457
        %459 = vmatprep.mubr.f32.mxu0 0.0
        %460 = vmatmul.mubr.f32.gmra.mxu0 %v351
        %v461 = vpop.f32.mrf.mxu0
        %v462 = vadd.f32 0.0, %v461
        %v463 = vpop.f32.mrf.mxu0
        %v464 = vadd.f32 0.0, %v463
        %465 = vdwg.mxu0
        %466 = vst [vmem:[%s254] sm:$0xff] %v420
        %467 = vst [vmem:[%s254 + $0x8] sm:$0xff] %v422
        %468 = vst [vmem:[%s254 + $0x10] sm:$0xff] %v426
        %469 = vst [vmem:[%s254 + $0x18] sm:$0xff] %v428
        %470 = vst [vmem:[%s254 + $0x20] sm:$0xff] %v432
        %471 = vst [vmem:[%s254 + $0x28] sm:$0xff] %v434
        %472 = vst [vmem:[%s254 + $0x30] sm:$0xff] %v438
        %473 = vst [vmem:[%s254 + $0x38] sm:$0xff] %v440
        %474 = vst [vmem:[%s254 + $0x40] sm:$0xff] %v444
        %475 = vst [vmem:[%s254 + $0x48] sm:$0xff] %v446
        %476 = vst [vmem:[%s254 + $0x50] sm:$0xff] %v450
        %477 = vst [vmem:[%s254 + $0x58] sm:$0xff] %v452
        %478 = vst [vmem:[%s254 + $0x60] sm:$0xff] %v456
        %479 = vst [vmem:[%s254 + $0x68] sm:$0xff] %v458
        %480 = vst [vmem:[%s254 + $0x70] sm:$0xff] %v462
        %481 = vst [vmem:[%s254 + $0x78] sm:$0xff] %v464
        %s482 = sand.u32 %s120, 1
        %s483 = scalar_lea.sflag [#allocation4], %s482
        %s484 = sand.u32 %s120, 1
        %s485 = smul.addr %s484, 128
        %s486 = scalar_lea.vmem [#allocation8], %s485
        // Predicated region
        $region45: #{tpu_custom_call.1} parent=31 // pred_check
          %p487 = pneg %p130
        $region46: #{tpu_custom_call.1} parent=31 // pred_check_branch
          %489 = sbr.rel (%p487) target = $region48
        $region47: #{tpu_custom_call.1} parent=31 // pred_region
          %s490 = smul.u32 2, %s28
          %s492 = ssub.s32 2048, 2048
          %493 = vsyncadd %s483, %s492
          %s494 = smul.addr %s27, 16
          %s495 = sadd.s32 %s490, %s494
          %s496 = smul.addr %s495, 128
          %s497 = scalar_lea.hbm %s3, %s496
          %s498 = sshll.u32 %s486, 4
          %s499 = int_to_ptr.vmem [resolvable:$true] %s498
          %504 = dma.vmem_to_hbm [thread:$0]  %s499, 2048, %s497, %s483, 256, 256, 16
        $region48: #{tpu_custom_call.1} parent=31 // pred_fallthru
          _
      $region32: #{tpu_custom_call.1} parent=5 // pred_fallthru
        _
      %p505 = scmp.le.s32.totalorder 2, %s18
      // Predicated region
      $region49: #{tpu_custom_call.1} parent=5 // pred_check
        %p506 = pneg %p505
      $region50: #{tpu_custom_call.1} parent=5 // pred_check_branch
        %508 = sbr.rel (%p506) target = $region52
      $region51: #{tpu_custom_call.1} parent=5 // pred_region
        %s509 = ssub.s32 %s18, 2
        // Predicated region
        $region53: #{tpu_custom_call.1} parent=51 // pred_check
          %p510 = pneg %p136
        $region54: #{tpu_custom_call.1} parent=51 // pred_check_branch
          %512 = sbr.rel (%p510) target = $region56
        $region55: #{tpu_custom_call.1} parent=51 // pred_region
          %s513 = sand.u32 %s121, 1
          %s514 = scalar_lea.sflag [#allocation4], %s513
          %s515 = sand.u32 %s121, 1
          %s516 = smul.addr %s515, 128
          %s517 = scalar_lea.vmem [#allocation8], %s516
          %518 = dma.done %s514, 2048
        $region56: #{tpu_custom_call.1} parent=51 // pred_fallthru
          _
      $region52: #{tpu_custom_call.1} parent=5 // pred_fallthru
        _
    $region6: #{tpu_custom_call.1} parent=1 // loop_footer
      %s22 = sadd.s32 1, %s18
    $region7: #{tpu_custom_call.1} parent=1 // loop_footer_branch
      %17 = sbr.rel target = $region3
    $region8: #{tpu_custom_call.1} parent=1 // loop_exit
      _
    %519 = vsyncpa [#allocation3], 1
    %s520 = scalar_lea.sflag [#allocation3], 1
    %521 = vsyncpa %s520, 1
    %522 = vsyncpa [#allocation6], 1
    %s523 = scalar_lea.sflag [#allocation6], 1
    %524 = vsyncpa %s523, 1
    %525 = vsyncpa [#allocation4], 1
    %s526 = scalar_lea.sflag [#allocation4], 1
    %527 = vsyncpa %s526, 1

</llo_original>
